<compile_context>
chip_gen: v6e
topology: v6e:2x2x1
jax: 0.10.0
libtpu: 0.0.40
codegen_flags: <defaults>
</compile_context>

<pallas_src>
import functools

import jax
import jax.numpy as jnp
from jax.experimental import pallas as pl
from jax.experimental.pallas import tpu as pltpu


# ----------------------------------------------------------------------------
# Pallas kernel: fused batched GEMM + bias + activation.
#   out[g] = act(a[g] @ b[g] + bias[0])
# a: (G, m, k) bf16, b: (G, k, n) bf16, bias: (1, bm, bn) f32 broadcastable to
# (m, n), out: (G, m, n) f32.  n is the lane-dense dimension.
# ----------------------------------------------------------------------------
def _fused_gemm_kernel(a_ref, b_ref, bias_ref, o_ref, *, act):
    acc = jnp.dot(a_ref[0], b_ref[0], preferred_element_type=jnp.float32)
    y = acc + bias_ref[0]
    if act == "relu":
        y = jnp.maximum(y, 0.0)
    elif act == "tanh":
        y = jnp.tanh(y)
    o_ref[0] = y.astype(o_ref.dtype)


def batched_fused_gemm(a, b, bias, act):
    G, m, k = a.shape
    _, _, n = b.shape
    _, bm, bn = bias.shape
    kernel = functools.partial(_fused_gemm_kernel, act=act)
    return pl.pallas_call(
        kernel,
        out_shape=jax.ShapeDtypeStruct((G, m, n), jnp.float32),
        grid_spec=pltpu.PrefetchScalarGridSpec(
            num_scalar_prefetch=0,
            grid=(G,),
            in_specs=[
                pl.BlockSpec((1, m, k), lambda g: (g, 0, 0)),
                pl.BlockSpec((1, k, n), lambda g: (g, 0, 0)),
                pl.BlockSpec((1, bm, bn), lambda g: (0, 0, 0)),
            ],
            out_specs=pl.BlockSpec((1, m, n), lambda g: (g, 0, 0)),
        ),
        compiler_params=pltpu.CompilerParams(
            dimension_semantics=("parallel",)),
    )(a, b, bias)


# ----------------------------------------------------------------------------
# Layer 1: ConvTranspose3d(k=4, s=1, p=0) on a (B, Ci, 1, 1, 1) input.
# This is exactly a dense map (B, Ci) -> (B, 4, 4, 4, Co); BN scale is folded
# into the weight columns, BN shift + conv bias into the bias row.  Output
# columns are ordered (od, oh, ow, co) so the result reshapes directly to the
# channel-last activation layout.  Output last dim = 1024 lanes (lane-dense).
# ----------------------------------------------------------------------------
def convT_first_layer(vector, w, scale, shift):
    B, Ci = vector.shape
    _, Co, k, _, _ = w.shape
    wr = jnp.transpose(w, (0, 2, 3, 4, 1)) * scale        # (Ci, k, k, k, Co)
    wr = wr.reshape(Ci, k * k * k * Co)
    bias_cols = jnp.broadcast_to(shift, (k * k * k, Co)).reshape(1, 1, -1)
    out = batched_fused_gemm(
        vector.astype(jnp.bfloat16)[None],                 # (1, B, Ci)
        wr.astype(jnp.bfloat16)[None],                     # (1, Ci, 64*Co)
        bias_cols.astype(jnp.float32),                     # (1, 1, 64*Co)
        act="relu")                                        # (1, B, 64*Co)
    return out[0].reshape(B, k, k, k, Co)                  # channel-last


# ----------------------------------------------------------------------------
# Layers 2/3: ConvTranspose3d(k=4, s=2, p=1) via polyphase decomposition.
# For each output phase (pd, ph, pw) in {0,1}^3 only 2 kernel taps per spatial
# dim contribute:
#   out[2q + p] = w[3 - p] * xpad[q + p] + w[1 - p] * xpad[q + p + 1]
# (xpad = input padded by 1).  Each phase is a (Co, 8*Ci) x (8*Ci, M) GEMM with
# M = B*I^3 lane-dense; the 8 phases form the Pallas grid.
# ----------------------------------------------------------------------------
def convT_stride2(x, w, scale, shift, *, act, out_layout):
    B, I, _, _, Ci = x.shape
    _, Co, k, _, _ = w.shape              # k == 4
    O = 2 * I
    M = B * I * I * I
    K = 8 * Ci

    xpad = jnp.pad(x.astype(jnp.bfloat16),
                   ((0, 0), (1, 1), (1, 1), (1, 1), (0, 0)))
    w_s = (w * scale[None, :, None, None, None]).astype(jnp.bfloat16)

    a_list, b_list = [], []
    for pd in (0, 1):
        for ph in (0, 1):
            for pw in (0, 1):
                wins, wtaps = [], []
                for td in (0, 1):
                    for th in (0, 1):
                        for tw in (0, 1):
                            wins.append(
                                xpad[:, pd + td:pd + td + I,
                                        ph + th:ph + th + I,
                                        pw + tw:pw + tw + I, :])
                            wtaps.append(
                                w_s[:, :, 3 - pd - 2 * td,
                                          3 - ph - 2 * th,
                                          3 - pw - 2 * tw])   # (Ci, Co)
                win = jnp.stack(wins, axis=0)                  # (8, B, I, I, I, Ci)
                b_list.append(
                    jnp.transpose(win, (0, 5, 1, 2, 3, 4)).reshape(K, M))
                wp = jnp.stack(wtaps, axis=0)                  # (8, Ci, Co)
                a_list.append(jnp.transpose(wp, (2, 0, 1)).reshape(Co, K))

    a = jnp.stack(a_list, axis=0)                              # (8, Co, K) bf16
    bmat = jnp.stack(b_list, axis=0)                           # (8, K, M) bf16
    bias = shift.reshape(1, Co, 1).astype(jnp.float32)

    out_t = batched_fused_gemm(a, bmat, bias, act=act)         # (8, Co, M) f32
    out_t = out_t.reshape(2, 2, 2, Co, B, I, I, I)             # (pd,ph,pw,co,b,qd,qh,qw)
    if out_layout == "ndhwc":      # channel-last, feeds next layer
        out = jnp.transpose(out_t, (4, 5, 0, 6, 1, 7, 2, 3))
        return out.reshape(B, O, O, O, Co)
    # "ncdhw": PyTorch output layout
    out = jnp.transpose(out_t, (4, 3, 5, 0, 6, 1, 7, 2))
    return out.reshape(B, Co, O, O, O)


# ----------------------------------------------------------------------------
# Deterministic parameter construction (synthetic weights, no checkpoint).
# ConvTranspose3d bias (PyTorch default bias=True) and eval-mode BatchNorm are
# folded into a per-channel (scale, shift).
# ----------------------------------------------------------------------------
def make_layer_params(key, ci, co, k, with_bn=True):
    kw, kcb, kg, kb, km, kv = jax.random.split(key, 6)
    w = 0.05 * jax.random.normal(kw, (ci, co, k, k, k), jnp.float32)
    conv_b = 0.05 * jax.random.normal(kcb, (co,), jnp.float32)
    if with_bn:
        gamma = 1.0 + 0.1 * jax.random.normal(kg, (co,), jnp.float32)
        beta = 0.1 * jax.random.normal(kb, (co,), jnp.float32)
        mean = 0.1 * jax.random.normal(km, (co,), jnp.float32)
        var = jnp.abs(jax.random.normal(kv, (co,), jnp.float32)) + 0.5
        scale = gamma / jnp.sqrt(var + 1e-5)
        shift = beta + scale * (conv_b - mean)
    else:
        scale = jnp.ones((co,), jnp.float32)
        shift = conv_b
    return w, scale, shift


def make_generator_params(key, n_latent):
    k1, k2, k3 = jax.random.split(key, 3)
    return (
        make_layer_params(k1, n_latent, 16, 4, with_bn=True),
        make_layer_params(k2, 16, 8, 4, with_bn=True),
        make_layer_params(k3, 8, 1, 4, with_bn=False),
    )


def generator_forward(vector, params):
    # PyTorch: vector.reshape(*vector.shape, 1, 1, 1) -> (B, nLatent, 1, 1, 1)
    (w1, s1, b1), (w2, s2, b2), (w3, s3, b3) = params
    x = convT_first_layer(vector, w1, s1, b1)                        # (B,4,4,4,16)
    x = convT_stride2(x, w2, s2, b2, act="relu", out_layout="ndhwc")  # (B,8,8,8,8)
    x = convT_stride2(x, w3, s3, b3, act="tanh", out_layout="ncdhw")  # (B,1,16,16,16)
    return x


if __name__ == "__main__":
    B, N_LATENT = 2, 32
    key = jax.random.PRNGKey(0)
    k_in, k_par = jax.random.split(key)
    vector = jax.random.normal(k_in, (B, N_LATENT), jnp.float32)
    params = make_generator_params(k_par, N_LATENT)

    out = jax.jit(generator_forward)(vector, params)
    out = jax.block_until_ready(out)
    assert out.shape == (B, 1, 16, 16, 16), out.shape
    assert bool(jnp.all(jnp.isfinite(out)))
    print("KERNEL_OK")
</pallas_src>

<mosaic_0001>
module attributes {stable_mosaic.version = 11 : i64} {
  func.func @_fused_gemm_kernel(%arg0: i32, %arg1: memref<1x2x32xbf16, #tpu.memory_space<vmem>>, %arg2: memref<1x32x1024xbf16, #tpu.memory_space<vmem>>, %arg3: memref<1x1x1024xf32, #tpu.memory_space<vmem>>, %arg4: memref<1x2x1024xf32, #tpu.memory_space<vmem>>) attributes {dimension_semantics = [#tpu.dimension_semantics<parallel>], iteration_bounds = array<i64: 1>, scalar_prefetch = 0 : i64, scratch_operands = 0 : i64, tpu.core_type = #tpu.core_type<tc>, window_params = [{transform_indices = @transform_0, window_bounds = array<i64: 1, 2, 32>}, {transform_indices = @transform_1, window_bounds = array<i64: 1, 32, 1024>}, {pipeline_mode = #tpu.pipeline_mode<synchronous>, transform_indices = @transform_2, window_bounds = array<i64: 1, 1, 1024>}, {transform_indices = @transform_3, window_bounds = array<i64: 1, 2, 1024>}]} {
    %c0 = arith.constant 0 : index
    %c0_0 = arith.constant 0 : index
    %c0_1 = arith.constant 0 : index
    %0 = vector.load %arg1[%c0, %c0_0, %c0_1] : memref<1x2x32xbf16, #tpu.memory_space<vmem>>, vector<1x2x32xbf16>
    %1 = vector.shape_cast %0 : vector<1x2x32xbf16> to vector<2x32xbf16>
    %c0_2 = arith.constant 0 : index
    %c0_3 = arith.constant 0 : index
    %c0_4 = arith.constant 0 : index
    %2 = vector.load %arg2[%c0_2, %c0_3, %c0_4] : memref<1x32x1024xbf16, #tpu.memory_space<vmem>>, vector<1x32x1024xbf16>
    %3 = vector.shape_cast %2 : vector<1x32x1024xbf16> to vector<32x1024xbf16>
    %cst = arith.constant dense<0.000000e+00> : vector<2x1024xf32>
    %4 = tpu.matmul %1, %3, %cst {dimension_numbers = #tpu.dot_dimension_numbers<[1], [0], [0], [1], [0, 0, 1, 1], [], []>} : vector<2x32xbf16>, vector<32x1024xbf16>, vector<2x1024xf32> -> vector<2x1024xf32>
    %c0_5 = arith.constant 0 : index
    %c0_6 = arith.constant 0 : index
    %c0_7 = arith.constant 0 : index
    %5 = vector.load %arg3[%c0_5, %c0_6, %c0_7] : memref<1x1x1024xf32, #tpu.memory_space<vmem>>, vector<1x1x1024xf32>
    %6 = vector.shape_cast %5 : vector<1x1x1024xf32> to vector<1x1024xf32>
    %7 = vector.broadcast %6 : vector<1x1024xf32> to vector<2x1024xf32>
    %8 = arith.addf %4, %7 : vector<2x1024xf32>
    %cst_8 = arith.constant 0.000000e+00 : f32
    %9 = vector.broadcast %cst_8 : f32 to vector<2x1024xf32>
    %10 = arith.maximumf %8, %9 : vector<2x1024xf32>
    %c0_9 = arith.constant 0 : index
    %c0_10 = arith.constant 0 : index
    %c0_11 = arith.constant 0 : index
    %11 = vector.load %arg4[%c0_9, %c0_10, %c0_11] : memref<1x2x1024xf32, #tpu.memory_space<vmem>>, vector<1x2x1024xf32>
    %12 = vector.shape_cast %11 : vector<1x2x1024xf32> to vector<2x1024xf32>
    %13 = vector.shape_cast %10 : vector<2x1024xf32> to vector<1x2x1024xf32>
    tpu.vector_store %arg4[%c0_9, %c0_10, %c0_11], %13 {strides = array<i32>} : memref<1x2x1024xf32, #tpu.memory_space<vmem>>, vector<1x2x1024xf32>,
    return
  }
  func.func @transform_0(%arg0: i32) -> (i32, i32, i32) {
    %c0_i32 = arith.constant 0 : i32
    %c0_i32_0 = arith.constant 0 : i32
    %c0_i32_1 = arith.constant 0 : i32
    return %arg0, %c0_i32, %c0_i32_0 : i32, i32, i32
  }
  func.func @transform_1(%arg0: i32) -> (i32, i32, i32) {
    %c0_i32 = arith.constant 0 : i32
    %c0_i32_0 = arith.constant 0 : i32
    %c0_i32_1 = arith.constant 0 : i32
    return %arg0, %c0_i32, %c0_i32_0 : i32, i32, i32
  }
  func.func @transform_2(%arg0: i32) -> (i32, i32, i32) {
    %c0_i32 = arith.constant 0 : i32
    %c0_i32_0 = arith.constant 0 : i32
    %c0_i32_1 = arith.constant 0 : i32
    %c0_i32_2 = arith.constant 0 : i32
    return %c0_i32, %c0_i32_0, %c0_i32_1 : i32, i32, i32
  }
  func.func @transform_3(%arg0: i32) -> (i32, i32, i32) {
    %c0_i32 = arith.constant 0 : i32
    %c0_i32_0 = arith.constant 0 : i32
    %c0_i32_1 = arith.constant 0 : i32
    return %arg0, %c0_i32, %c0_i32_0 : i32, i32, i32
  }
}

module attributes {stable_mosaic.version = 11 : i64} {
  func.func @_fused_gemm_kernel(%arg0: i32, %arg1: memref<1x8x128xbf16, #tpu.memory_space<vmem>>, %arg2: memref<1x128x128xbf16, #tpu.memory_space<vmem>>, %arg3: memref<1x8x1xf32, #tpu.memory_space<vmem>>, %arg4: memref<1x8x128xf32, #tpu.memory_space<vmem>>) attributes {dimension_semantics = [#tpu.dimension_semantics<parallel>], iteration_bounds = array<i64: 8>, scalar_prefetch = 0 : i64, scratch_operands = 0 : i64, tpu.core_type = #tpu.core_type<tc>, window_params = [{transform_indices = @transform_0, window_bounds = array<i64: 1, 8, 128>}, {transform_indices = @transform_1, window_bounds = array<i64: 1, 128, 128>}, {pipeline_mode = #tpu.pipeline_mode<synchronous>, transform_indices = @transform_2, window_bounds = array<i64: 1, 8, 1>}, {transform_indices = @transform_3, window_bounds = array<i64: 1, 8, 128>}]} {
    %c0 = arith.constant 0 : index
    %c0_0 = arith.constant 0 : index
    %c0_1 = arith.constant 0 : index
    %0 = vector.load %arg1[%c0, %c0_0, %c0_1] : memref<1x8x128xbf16, #tpu.memory_space<vmem>>, vector<1x8x128xbf16>
    %1 = vector.shape_cast %0 : vector<1x8x128xbf16> to vector<8x128xbf16>
    %c0_2 = arith.constant 0 : index
    %c0_3 = arith.constant 0 : index
    %c0_4 = arith.constant 0 : index
    %2 = vector.load %arg2[%c0_2, %c0_3, %c0_4] : memref<1x128x128xbf16, #tpu.memory_space<vmem>>, vector<1x128x128xbf16>
    %3 = vector.shape_cast %2 : vector<1x128x128xbf16> to vector<128x128xbf16>
    %cst = arith.constant dense<0.000000e+00> : vector<8x128xf32>
    %4 = tpu.matmul %1, %3, %cst {dimension_numbers = #tpu.dot_dimension_numbers<[1], [0], [0], [1], [0, 0, 1, 1], [], []>} : vector<8x128xbf16>, vector<128x128xbf16>, vector<8x128xf32> -> vector<8x128xf32>
    %c0_5 = arith.constant 0 : index
    %c0_6 = arith.constant 0 : index
    %c0_7 = arith.constant 0 : index
    %5 = vector.load %arg3[%c0_5, %c0_6, %c0_7] : memref<1x8x1xf32, #tpu.memory_space<vmem>>, vector<1x8x1xf32>
    %6 = vector.shape_cast %5 : vector<1x8x1xf32> to vector<8x1xf32>
    %7 = vector.broadcast %6 : vector<8x1xf32> to vector<8x128xf32>
    %8 = arith.addf %4, %7 : vector<8x128xf32>
    %cst_8 = arith.constant 0.000000e+00 : f32
    %9 = vector.broadcast %cst_8 : f32 to vector<8x128xf32>
    %10 = arith.maximumf %8, %9 : vector<8x128xf32>
    %c0_9 = arith.constant 0 : index
    %c0_10 = arith.constant 0 : index
    %c0_11 = arith.constant 0 : index
    %11 = vector.load %arg4[%c0_9, %c0_10, %c0_11] : memref<1x8x128xf32, #tpu.memory_space<vmem>>, vector<1x8x128xf32>
    %12 = vector.shape_cast %11 : vector<1x8x128xf32> to vector<8x128xf32>
    %13 = vector.shape_cast %10 : vector<8x128xf32> to vector<1x8x128xf32>
    tpu.vector_store %arg4[%c0_9, %c0_10, %c0_11], %13 {strides = array<i32>} : memref<1x8x128xf32, #tpu.memory_space<vmem>>, vector<1x8x128xf32>,
    return
  }
  func.func @transform_0(%arg0: i32) -> (i32, i32, i32) {
    %c0_i32 = arith.constant 0 : i32
    %c0_i32_0 = arith.constant 0 : i32
    %c0_i32_1 = arith.constant 0 : i32
    return %arg0, %c0_i32, %c0_i32_0 : i32, i32, i32
  }
  func.func @transform_1(%arg0: i32) -> (i32, i32, i32) {
    %c0_i32 = arith.constant 0 : i32
    %c0_i32_0 = arith.constant 0 : i32
    %c0_i32_1 = arith.constant 0 : i32
    return %arg0, %c0_i32, %c0_i32_0 : i32, i32, i32
  }
  func.func @transform_2(%arg0: i32) -> (i32, i32, i32) {
    %c0_i32 = arith.constant 0 : i32
    %c0_i32_0 = arith.constant 0 : i32
    %c0_i32_1 = arith.constant 0 : i32
    %c0_i32_2 = arith.constant 0 : i32
    return %c0_i32, %c0_i32_0, %c0_i32_1 : i32, i32, i32
  }
  func.func @transform_3(%arg0: i32) -> (i32, i32, i32) {
    %c0_i32 = arith.constant 0 : i32
    %c0_i32_0 = arith.constant 0 : i32
    %c0_i32_1 = arith.constant 0 : i32
    return %arg0, %c0_i32, %c0_i32_0 : i32, i32, i32
  }
}

module attributes {stable_mosaic.version = 11 : i64} {
  func.func @_fused_gemm_kernel(%arg0: i32, %arg1: memref<1x1x64xbf16, #tpu.memory_space<vmem>>, %arg2: memref<1x64x1024xbf16, #tpu.memory_space<vmem>>, %arg3: memref<1x1x1xf32, #tpu.memory_space<vmem>>, %arg4: memref<1x1x1024xf32, #tpu.memory_space<vmem>>) attributes {dimension_semantics = [#tpu.dimension_semantics<parallel>], iteration_bounds = array<i64: 8>, scalar_prefetch = 0 : i64, scratch_operands = 0 : i64, tpu.core_type = #tpu.core_type<tc>, window_params = [{transform_indices = @transform_0, window_bounds = array<i64: 1, 1, 64>}, {transform_indices = @transform_1, window_bounds = array<i64: 1, 64, 1024>}, {pipeline_mode = #tpu.pipeline_mode<synchronous>, transform_indices = @transform_2, window_bounds = array<i64: 1, 1, 1>}, {transform_indices = @transform_3, window_bounds = array<i64: 1, 1, 1024>}]} {
    %c0 = arith.constant 0 : index
    %c0_0 = arith.constant 0 : index
    %c0_1 = arith.constant 0 : index
    %0 = vector.load %arg1[%c0, %c0_0, %c0_1] : memref<1x1x64xbf16, #tpu.memory_space<vmem>>, vector<1x1x64xbf16>
    %1 = vector.shape_cast %0 : vector<1x1x64xbf16> to vector<1x64xbf16>
    %c0_2 = arith.constant 0 : index
    %c0_3 = arith.constant 0 : index
    %c0_4 = arith.constant 0 : index
    %2 = vector.load %arg2[%c0_2, %c0_3, %c0_4] : memref<1x64x1024xbf16, #tpu.memory_space<vmem>>, vector<1x64x1024xbf16>
    %3 = vector.shape_cast %2 : vector<1x64x1024xbf16> to vector<64x1024xbf16>
    %cst = arith.constant dense<0.000000e+00> : vector<1x1024xf32>
    %4 = tpu.matmul %1, %3, %cst {dimension_numbers = #tpu.dot_dimension_numbers<[1], [0], [0], [1], [0, 0, 1, 1], [], []>} : vector<1x64xbf16>, vector<64x1024xbf16>, vector<1x1024xf32> -> vector<1x1024xf32>
    %c0_5 = arith.constant 0 : index
    %c0_6 = arith.constant 0 : index
    %c0_7 = arith.constant 0 : index
    %5 = vector.load %arg3[%c0_5, %c0_6, %c0_7] : memref<1x1x1xf32, #tpu.memory_space<vmem>>, vector<1x1x1xf32>
    %6 = vector.shape_cast %5 : vector<1x1x1xf32> to vector<1x1xf32>
    %7 = vector.broadcast %6 : vector<1x1xf32> to vector<1x1024xf32>
    %8 = arith.addf %4, %7 : vector<1x1024xf32>
    %9 = math.tanh %8 : vector<1x1024xf32>
    %c0_8 = arith.constant 0 : index
    %c0_9 = arith.constant 0 : index
    %c0_10 = arith.constant 0 : index
    %10 = vector.load %arg4[%c0_8, %c0_9, %c0_10] : memref<1x1x1024xf32, #tpu.memory_space<vmem>>, vector<1x1x1024xf32>
    %11 = vector.shape_cast %10 : vector<1x1x1024xf32> to vector<1x1024xf32>
    %12 = vector.shape_cast %9 : vector<1x1024xf32> to vector<1x1x1024xf32>
    tpu.vector_store %arg4[%c0_8, %c0_9, %c0_10], %12 {strides = array<i32>} : memref<1x1x1024xf32, #tpu.memory_space<vmem>>, vector<1x1x1024xf32>,
    return
  }
  func.func @transform_0(%arg0: i32) -> (i32, i32, i32) {
    %c0_i32 = arith.constant 0 : i32
    %c0_i32_0 = arith.constant 0 : i32
    %c0_i32_1 = arith.constant 0 : i32
    return %arg0, %c0_i32, %c0_i32_0 : i32, i32, i32
  }
  func.func @transform_1(%arg0: i32) -> (i32, i32, i32) {
    %c0_i32 = arith.constant 0 : i32
    %c0_i32_0 = arith.constant 0 : i32
    %c0_i32_1 = arith.constant 0 : i32
    return %arg0, %c0_i32, %c0_i32_0 : i32, i32, i32
  }
  func.func @transform_2(%arg0: i32) -> (i32, i32, i32) {
    %c0_i32 = arith.constant 0 : i32
    %c0_i32_0 = arith.constant 0 : i32
    %c0_i32_1 = arith.constant 0 : i32
    %c0_i32_2 = arith.constant 0 : i32
    return %c0_i32, %c0_i32_0, %c0_i32_1 : i32, i32, i32
  }
  func.func @transform_3(%arg0: i32) -> (i32, i32, i32) {
    %c0_i32 = arith.constant 0 : i32
    %c0_i32_0 = arith.constant 0 : i32
    %c0_i32_1 = arith.constant 0 : i32
    return %arg0, %c0_i32, %c0_i32_0 : i32, i32, i32
  }
}

</mosaic_0001>

<llo_original>
// kernel: generator_forward.3
$region0: #{generator_forward.3}
  #allocation0 [shape = 'u32[]', space=smem, size = 0x4, offset = 0x4, fixed_abs, tag = 'smem constant byte address 0x4 - core index']
  #allocation1 [shape = 'u32[144,128]{1,0:T(1,128)}', space=vmem, size = 0x12000, scoped, tag = 'internal scratch']
  %s0 = inlined_call_operand.vmem [shape: bf16[1,2,32], index: 0, kind: input, shape index: {}]
  %s1 = inlined_call_operand.vmem [shape: bf16[1,32,1024], index: 1, kind: input, shape index: {}]
  %s2 = inlined_call_operand.vmem [shape: f32[1,1,1024], index: 2, kind: input, shape index: {}]
  %s3 = inlined_call_operand.vmem [shape: f32[1,2,1024], index: 3, kind: output, shape index: {}]
  %s4 = sld [smem:[#allocation0]]
  $region22: #{generator_forward.3} parent=0
    _
  %s6 = ssub.s32 1, %s4
  %s7 = scalar_select 0, %s6, %s4
  // Predicated region
  $region2: #{generator_forward.3} parent=0 // pred_check
    _
  $region3: #{generator_forward.3} parent=0 // pred_check_branch
    %9 = sbr.rel (0) target = $region5
  $region4: #{generator_forward.3} parent=0 // pred_region
    _
  $region5: #{generator_forward.3} parent=0 // pred_fallthru
    _
  // Predicated region
  $region6: #{generator_forward.3} parent=0 // pred_check
    _
  $region7: #{generator_forward.3} parent=0 // pred_check_branch
    %11 = sbr.rel (0) target = $region9
  $region8: #{generator_forward.3} parent=0 // pred_region
    _
  $region9: #{generator_forward.3} parent=0 // pred_fallthru
    _
  // Predicated region
  $region10: #{generator_forward.3} parent=0 // pred_check
    _
  $region11: #{generator_forward.3} parent=0 // pred_check_branch
    %13 = sbr.rel (0) target = $region13
  $region12: #{generator_forward.3} parent=0 // pred_region
    _
  $region13: #{generator_forward.3} parent=0 // pred_fallthru
    _
  %v15 = vld [vmem:[%s0] sm:$0x1]
  %v16 = vld [vmem:[%s1] sm:$0xff]
  %v17 = vld [vmem:[%s1 + $0x8] sm:$0xff]
  %v18 = vld [vmem:[%s1 + $0x10] sm:$0xff]
  %v19 = vld [vmem:[%s1 + $0x18] sm:$0xff]
  %v20 = vld [vmem:[%s1 + $0x20] sm:$0xff]
  %v21 = vld [vmem:[%s1 + $0x28] sm:$0xff]
  %v22 = vld [vmem:[%s1 + $0x30] sm:$0xff]
  %v23 = vld [vmem:[%s1 + $0x38] sm:$0xff]
  %v24 = vld [vmem:[%s1 + $0x40] sm:$0xff]
  %v25 = vld [vmem:[%s1 + $0x48] sm:$0xff]
  %v26 = vld [vmem:[%s1 + $0x50] sm:$0xff]
  %v27 = vld [vmem:[%s1 + $0x58] sm:$0xff]
  %v28 = vld [vmem:[%s1 + $0x60] sm:$0xff]
  %v29 = vld [vmem:[%s1 + $0x68] sm:$0xff]
  %v30 = vld [vmem:[%s1 + $0x70] sm:$0xff]
  %v31 = vld [vmem:[%s1 + $0x78] sm:$0xff]
  %v32 = vld [vmem:[%s2] sm:$0xff]
  %v34 = vlaneseq
  %v35 = vshrl.u32 %v34, 7
  %v36 = vsub.s32 0, %v35
  %v37 = vrot.slane %v32, %v36
  %v38 = vlaneseq
  %v39 = vshrl.u32 %v38, 7
  %v40 = vsub.s32 1, %v39
  %v41 = vrot.slane %v32, %v40
  %v42 = vlaneseq
  %v43 = vshrl.u32 %v42, 7
  %v44 = vsub.s32 2, %v43
  %v45 = vrot.slane %v32, %v44
  %v46 = vlaneseq
  %v47 = vshrl.u32 %v46, 7
  %v48 = vsub.s32 3, %v47
  %v49 = vrot.slane %v32, %v48
  %v50 = vlaneseq
  %v51 = vshrl.u32 %v50, 7
  %v52 = vsub.s32 4, %v51
  %v53 = vrot.slane %v32, %v52
  %v54 = vlaneseq
  %v55 = vshrl.u32 %v54, 7
  %v56 = vsub.s32 5, %v55
  %v57 = vrot.slane %v32, %v56
  %v58 = vlaneseq
  %v59 = vshrl.u32 %v58, 7
  %v60 = vsub.s32 6, %v59
  %v61 = vrot.slane %v32, %v60
  %v62 = vlaneseq
  %v63 = vshrl.u32 %v62, 7
  %v64 = vsub.s32 7, %v63
  %v65 = vrot.slane %v32, %v64
  %v90 = vunpack.c.l.b16 %v16
  %v91 = vunpack.c.h.b16 %v16
  %v92 = vunpack.c.l.b16 %v17
  %v93 = vunpack.c.h.b16 %v17
  %v94 = vunpack.c.l.b16 %v18
  %v95 = vunpack.c.h.b16 %v18
  %v96 = vunpack.c.l.b16 %v19
  %v97 = vunpack.c.h.b16 %v19
  %v98 = vunpack.c.l.b16 %v20
  %v99 = vunpack.c.h.b16 %v20
  %v100 = vunpack.c.l.b16 %v21
  %v101 = vunpack.c.h.b16 %v21
  %v102 = vunpack.c.l.b16 %v22
  %v103 = vunpack.c.h.b16 %v22
  %v104 = vunpack.c.l.b16 %v23
  %v105 = vunpack.c.h.b16 %v23
  %v106 = vunpack.c.l.b16 %v24
  %v107 = vunpack.c.h.b16 %v24
  %v108 = vunpack.c.l.b16 %v25
  %v109 = vunpack.c.h.b16 %v25
  %v110 = vunpack.c.l.b16 %v26
  %v111 = vunpack.c.h.b16 %v26
  %v112 = vunpack.c.l.b16 %v27
  %v113 = vunpack.c.h.b16 %v27
  %v114 = vunpack.c.l.b16 %v28
  %v115 = vunpack.c.h.b16 %v28
  %v116 = vunpack.c.l.b16 %v29
  %v117 = vunpack.c.h.b16 %v29
  %v118 = vunpack.c.l.b16 %v30
  %v119 = vunpack.c.h.b16 %v30
  %v120 = vunpack.c.l.b16 %v31
  %v121 = vunpack.c.h.b16 %v31
  %v122 = vpack.c.b16 %v98, %v90
  %v123 = vpack.c.b16 %v99, %v91
  %v124 = vpack.c.b16 %v100, %v92
  %v125 = vpack.c.b16 %v101, %v93
  %v126 = vpack.c.b16 %v102, %v94
  %v127 = vpack.c.b16 %v103, %v95
  %v128 = vpack.c.b16 %v104, %v96
  %v129 = vpack.c.b16 %v105, %v97
  %v130 = vpack.c.b16 %v114, %v106
  %v131 = vpack.c.b16 %v115, %v107
  %v132 = vpack.c.b16 %v116, %v108
  %v133 = vpack.c.b16 %v117, %v109
  %v134 = vpack.c.b16 %v118, %v110
  %v135 = vpack.c.b16 %v119, %v111
  %v136 = vpack.c.b16 %v120, %v112
  %v137 = vpack.c.b16 %v121, %v113
  %vm154 = vcmask 261120
  %v156 = vsel %vm154, %v15, 0
  %158 = vmatprep.subr.bf16.mxu0 0
  %159 = vmatpush1.bf16.msra.mxu0 0
  %160 = vmatprep.subr.bf16.mxu0 0
  %161 = vmatpush1.bf16.msra.mxu0 0
  %162 = vmatprep.subr.bf16.mxu0 0
  %163 = vmatpush1.bf16.msra.mxu0 0
  %164 = vmatprep.subr.bf16.mxu0 0
  %165 = vmatpush1.bf16.msra.mxu0 0
  %166 = vmatprep.subr.bf16.mxu0 0
  %167 = vmatpush1.bf16.msra.mxu0 0
  %168 = vmatprep.subr.bf16.mxu0 0
  %169 = vmatpush1.bf16.msra.mxu0 0
  %170 = vmatprep.subr.bf16.mxu0 %v131
  %171 = vmatpush1.bf16.msra.mxu0 %v130
  %172 = vmatprep.subr.bf16.mxu0 %v123
  %173 = vmatpush1.bf16.msra.mxu0 %v122
  %174 = vmatprep.subr.bf16.mxu0 0
  %175 = vmatpush2.bf16.msra.mxu0 0
  %176 = vmatprep.subr.bf16.mxu0 0
  %177 = vmatpush2.bf16.msra.mxu0 0
  %178 = vmatprep.subr.bf16.mxu0 0
  %179 = vmatpush2.bf16.msra.mxu0 0
  %180 = vmatprep.subr.bf16.mxu0 0
  %181 = vmatpush2.bf16.msra.mxu0 0
  %182 = vmatprep.subr.bf16.mxu0 0
  %183 = vmatpush2.bf16.msra.mxu0 0
  %184 = vmatprep.subr.bf16.mxu0 0
  %185 = vmatpush2.bf16.msra.mxu0 0
  %186 = vmatprep.subr.bf16.mxu0 0
  %187 = vmatpush2.bf16.msra.mxu0 0
  %188 = vmatprep.subr.bf16.mxu0 0
  %189 = vmatpush2.bf16.msra.mxu0 0
  %190 = vmatprep.mubr.bf16.mxu0 0
  %191 = vmatmul.mubr.bf16.gmra.mxu0 %v156
  %v192 = vpop.f32.mrf.mxu0
  %v193 = vadd.f32 %v37, %v192
  %v194 = vpop.f32.mrf.mxu0
  %v195 = vadd.f32 %v41, %v194
  %v196 = vpop.f32.mrf.mxu0
  %v197 = vpop.f32.mrf.mxu0
  %198 = vdwg.mxu0
  %199 = vmatprep.subr.bf16.mxu0 0
  %200 = vmatpush1.bf16.msra.mxu0 0
  %201 = vmatprep.subr.bf16.mxu0 0
  %202 = vmatpush1.bf16.msra.mxu0 0
  %203 = vmatprep.subr.bf16.mxu0 0
  %204 = vmatpush1.bf16.msra.mxu0 0
  %205 = vmatprep.subr.bf16.mxu0 0
  %206 = vmatpush1.bf16.msra.mxu0 0
  %207 = vmatprep.subr.bf16.mxu0 0
  %208 = vmatpush1.bf16.msra.mxu0 0
  %209 = vmatprep.subr.bf16.mxu0 0
  %210 = vmatpush1.bf16.msra.mxu0 0
  %211 = vmatprep.subr.bf16.mxu0 %v133
  %212 = vmatpush1.bf16.msra.mxu0 %v132
  %213 = vmatprep.subr.bf16.mxu0 %v125
  %214 = vmatpush1.bf16.msra.mxu0 %v124
  %215 = vmatprep.subr.bf16.mxu0 0
  %216 = vmatpush2.bf16.msra.mxu0 0
  %217 = vmatprep.subr.bf16.mxu0 0
  %218 = vmatpush2.bf16.msra.mxu0 0
  %219 = vmatprep.subr.bf16.mxu0 0
  %220 = vmatpush2.bf16.msra.mxu0 0
  %221 = vmatprep.subr.bf16.mxu0 0
  %222 = vmatpush2.bf16.msra.mxu0 0
  %223 = vmatprep.subr.bf16.mxu0 0
  %224 = vmatpush2.bf16.msra.mxu0 0
  %225 = vmatprep.subr.bf16.mxu0 0
  %226 = vmatpush2.bf16.msra.mxu0 0
  %227 = vmatprep.subr.bf16.mxu0 0
  %228 = vmatpush2.bf16.msra.mxu0 0
  %229 = vmatprep.subr.bf16.mxu0 0
  %230 = vmatpush2.bf16.msra.mxu0 0
  %231 = vmatprep.mubr.bf16.mxu0 0
  %232 = vmatmul.mubr.bf16.gmra.mxu0 %v156
  %v233 = vpop.f32.mrf.mxu0
  %v234 = vadd.f32 %v45, %v233
  %v235 = vpop.f32.mrf.mxu0
  %v236 = vadd.f32 %v49, %v235
  %v237 = vpop.f32.mrf.mxu0
  %v238 = vpop.f32.mrf.mxu0
  %239 = vdwg.mxu0
  %240 = vmatprep.subr.bf16.mxu0 0
  %241 = vmatpush1.bf16.msra.mxu0 0
  %242 = vmatprep.subr.bf16.mxu0 0
  %243 = vmatpush1.bf16.msra.mxu0 0
  %244 = vmatprep.subr.bf16.mxu0 0
  %245 = vmatpush1.bf16.msra.mxu0 0
  %246 = vmatprep.subr.bf16.mxu0 0
  %247 = vmatpush1.bf16.msra.mxu0 0
  %248 = vmatprep.subr.bf16.mxu0 0
  %249 = vmatpush1.bf16.msra.mxu0 0
  %250 = vmatprep.subr.bf16.mxu0 0
  %251 = vmatpush1.bf16.msra.mxu0 0
  %252 = vmatprep.subr.bf16.mxu0 %v135
  %253 = vmatpush1.bf16.msra.mxu0 %v134
  %254 = vmatprep.subr.bf16.mxu0 %v127
  %255 = vmatpush1.bf16.msra.mxu0 %v126
  %256 = vmatprep.subr.bf16.mxu0 0
  %257 = vmatpush2.bf16.msra.mxu0 0
  %258 = vmatprep.subr.bf16.mxu0 0
  %259 = vmatpush2.bf16.msra.mxu0 0
  %260 = vmatprep.subr.bf16.mxu0 0
  %261 = vmatpush2.bf16.msra.mxu0 0
  %262 = vmatprep.subr.bf16.mxu0 0
  %263 = vmatpush2.bf16.msra.mxu0 0
  %264 = vmatprep.subr.bf16.mxu0 0
  %265 = vmatpush2.bf16.msra.mxu0 0
  %266 = vmatprep.subr.bf16.mxu0 0
  %267 = vmatpush2.bf16.msra.mxu0 0
  %268 = vmatprep.subr.bf16.mxu0 0
  %269 = vmatpush2.bf16.msra.mxu0 0
  %270 = vmatprep.subr.bf16.mxu0 0
  %271 = vmatpush2.bf16.msra.mxu0 0
  %272 = vmatprep.mubr.bf16.mxu0 0
  %273 = vmatmul.mubr.bf16.gmra.mxu0 %v156
  %v274 = vpop.f32.mrf.mxu0
  %v275 = vadd.f32 %v53, %v274
  %v276 = vpop.f32.mrf.mxu0
  %v277 = vadd.f32 %v57, %v276
  %v278 = vpop.f32.mrf.mxu0
  %v279 = vpop.f32.mrf.mxu0
  %280 = vdwg.mxu0
  %281 = vmatprep.subr.bf16.mxu0 0
  %282 = vmatpush1.bf16.msra.mxu0 0
  %283 = vmatprep.subr.bf16.mxu0 0
  %284 = vmatpush1.bf16.msra.mxu0 0
  %285 = vmatprep.subr.bf16.mxu0 0
  %286 = vmatpush1.bf16.msra.mxu0 0
  %287 = vmatprep.subr.bf16.mxu0 0
  %288 = vmatpush1.bf16.msra.mxu0 0
  %289 = vmatprep.subr.bf16.mxu0 0
  %290 = vmatpush1.bf16.msra.mxu0 0
  %291 = vmatprep.subr.bf16.mxu0 0
  %292 = vmatpush1.bf16.msra.mxu0 0
  %293 = vmatprep.subr.bf16.mxu0 %v137
  %294 = vmatpush1.bf16.msra.mxu0 %v136
  %295 = vmatprep.subr.bf16.mxu0 %v129
  %296 = vmatpush1.bf16.msra.mxu0 %v128
  %297 = vmatprep.subr.bf16.mxu0 0
  %298 = vmatpush2.bf16.msra.mxu0 0
  %299 = vmatprep.subr.bf16.mxu0 0
  %300 = vmatpush2.bf16.msra.mxu0 0
  %301 = vmatprep.subr.bf16.mxu0 0
  %302 = vmatpush2.bf16.msra.mxu0 0
  %303 = vmatprep.subr.bf16.mxu0 0
  %304 = vmatpush2.bf16.msra.mxu0 0
  %305 = vmatprep.subr.bf16.mxu0 0
  %306 = vmatpush2.bf16.msra.mxu0 0
  %307 = vmatprep.subr.bf16.mxu0 0
  %308 = vmatpush2.bf16.msra.mxu0 0
  %309 = vmatprep.subr.bf16.mxu0 0
  %310 = vmatpush2.bf16.msra.mxu0 0
  %311 = vmatprep.subr.bf16.mxu0 0
  %312 = vmatpush2.bf16.msra.mxu0 0
  %313 = vmatprep.mubr.bf16.mxu0 0
  %314 = vmatmul.mubr.bf16.gmra.mxu0 %v156
  %v315 = vpop.f32.mrf.mxu0
  %v316 = vadd.f32 %v61, %v315
  %v317 = vpop.f32.mrf.mxu0
  %v318 = vadd.f32 %v65, %v317
  %v319 = vpop.f32.mrf.mxu0
  %v320 = vpop.f32.mrf.mxu0
  %321 = vdwg.mxu0
  %v322 = vmax.f32 %v193, 0.0
  %v323 = vmax.f32 %v195, 0.0
  %v324 = vmax.f32 %v234, 0.0
  %v325 = vmax.f32 %v236, 0.0
  %v326 = vmax.f32 %v275, 0.0
  %v327 = vmax.f32 %v277, 0.0
  %v328 = vmax.f32 %v316, 0.0
  %v329 = vmax.f32 %v318, 0.0
  %v338 = vcombine.low %v322, %v323
  %v339 = vcombine.low %v324, %v325
  %v341 = vunpack.c.l.s4 1983009808
  %v342 = vunpack.c.0.s8 %v341
  %v343 = vlaneseq
  %v344 = vshrl.u32 %v343, 7
  %v345 = vsub.s32 %v342, %v344
  %v346 = vrot.slane %v338, %v345
  %v348 = vunpack.c.l.s4 1983009808
  %v349 = vunpack.c.0.s8 %v348
  %v350 = vlaneseq
  %v351 = vshrl.u32 %v350, 7
  %v352 = vsub.s32 %v349, %v351
  %v353 = vrot.slane %v339, %v352
  %v354 = vcombine.low %v346, %v353
  %v355 = vcombine.low %v326, %v327
  %v356 = vcombine.low %v328, %v329
  %v358 = vunpack.c.l.s4 1983009808
  %v359 = vunpack.c.0.s8 %v358
  %v360 = vlaneseq
  %v361 = vshrl.u32 %v360, 7
  %v362 = vsub.s32 %v359, %v361
  %v363 = vrot.slane %v355, %v362
  %v365 = vunpack.c.l.s4 1983009808
  %v366 = vunpack.c.0.s8 %v365
  %v367 = vlaneseq
  %v368 = vshrl.u32 %v367, 7
  %v369 = vsub.s32 %v366, %v368
  %v370 = vrot.slane %v356, %v369
  %v371 = vcombine.low %v363, %v370
  %374 = vst [vmem:[%s3] sm:$0xff] %v354
  %375 = vst [vmem:[%s3 + $0x8] sm:$0xff] %v371
  // Predicated region
  $region14: #{generator_forward.3} parent=0 // pred_check
    _
  $region15: #{generator_forward.3} parent=0 // pred_check_branch
    %377 = sbr.rel (0) target = $region17
  $region16: #{generator_forward.3} parent=0 // pred_region
    _
  $region17: #{generator_forward.3} parent=0 // pred_fallthru
    _
  // Predicated region
  $region18: #{generator_forward.3} parent=0 // pred_check
    _
  $region19: #{generator_forward.3} parent=0 // pred_check_branch
    %379 = sbr.rel (0) target = $region21
  $region20: #{generator_forward.3} parent=0 // pred_region
    _
  $region21: #{generator_forward.3} parent=0 // pred_fallthru
    _

// kernel: generator_forward.4
$region0: #{generator_forward.4}
  #allocation0 [shape = 'u32[]', space=smem, size = 0x4, offset = 0x4, fixed_abs, tag = 'smem constant byte address 0x4 - core index']
  #allocation1 [shape = 'u32[144,128]{1,0:T(1,128)}', space=vmem, size = 0x12000, scoped, tag = 'internal scratch']
  %s0 = inlined_call_operand.vmem [shape: bf16[8,8,128], index: 0, kind: input, shape index: {}]
  %s1 = inlined_call_operand.vmem [shape: bf16[8,128,128], index: 1, kind: input, shape index: {}]
  %s2 = inlined_call_operand.vmem [shape: f32[1,8,1], index: 2, kind: input, shape index: {}]
  %s3 = inlined_call_operand.vmem [shape: f32[8,8,128], index: 3, kind: output, shape index: {}]
  %s4 = sld [smem:[#allocation0]]
  $region45: #{generator_forward.4} parent=0
    _
  %s6 = ssub.s32 1, %s4
  %s7 = scalar_select 0, %s6, %s4
  loop: start=0, step=1, limit=10
  $region2: #{generator_forward.4} parent=0 // loop_pre_header
    _
  $region3: #{generator_forward.4} parent=0 // loop_header
    %s9 = sphi 0, %s13
    %p10 = scmp.ge.s32.totalorder %s9, 10
    %s19 = sphi 0, %s21
    %s22 = sphi 0, %s19
    %s23 = sphi 0, %s22
    %s39 = sphi 0, %s23
    %s45 = sphi 0, %s47
    %s48 = sphi 0, %s45
    %s49 = sphi 0, %s48
    %s65 = sphi 0, %s49
    %s69 = sphi 0, %s69
    %s71 = sphi 0, %s69
    %s72 = sphi 0, %s71
    %s86 = sphi 0, %s72
    %s92 = sphi 0, %s94
    %s95 = sphi 0, %s92
    %s96 = sphi 0, %s95
    %s112 = sphi 0, %s96
  $region4: #{generator_forward.4} parent=0 // loop_header_branch
    %12 = sbr.rel (%p10) target = $region8
  $region5: #{generator_forward.4} parent=0 // loop_body
    %s14 = ssub.s32 %s9, 1
    %s15 = ssub.s32 %s9, 2
    %s16 = sadd.s32 %s9, 1
    %s17 = ssub.s32 %s9, %s16
    %p18 = scmp.eq.s32.totalorder %s17, 0
    %s20 = sadd.s32 %s19, 1
    %s21 = scalar_select %p18, %s19, %s20
    %p24 = pneg %p18
    %p25 = scmp.eq.s32.totalorder %s9, 7
    %p26 = por %p24, %p25
    %p27 = scmp.ne.s32.totalorder %s19, %s22
    %p28 = scmp.eq.s32.totalorder %s9, 0
    %p29 = por %p27, %p28
    %p30 = scmp.ne.s32.totalorder %s19, %s22
    %p31 = scmp.eq.s32.totalorder %s14, 7
    %p32 = por %p30, %p31
    %p33 = scmp.ne.s32.totalorder %s22, %s23
    %p34 = scmp.eq.s32.totalorder %s14, 0
    %p35 = por %p33, %p34
    %p36 = scmp.ne.s32.totalorder %s22, %s23
    %p37 = scmp.eq.s32.totalorder %s15, 7
    %p38 = por %p36, %p37
    %p40 = scmp.ne.s32.totalorder %s23, %s39
    %p41 = scmp.eq.s32.totalorder %s15, 0
    %p42 = por %p40, %p41
    %s43 = ssub.s32 %s9, %s16
    %p44 = scmp.eq.s32.totalorder %s43, 0
    %s46 = sadd.s32 %s45, 1
    %s47 = scalar_select %p44, %s45, %s46
    %p50 = pneg %p44
    %p51 = scmp.eq.s32.totalorder %s9, 7
    %p52 = por %p50, %p51
    %p53 = scmp.ne.s32.totalorder %s45, %s48
    %p54 = scmp.eq.s32.totalorder %s9, 0
    %p55 = por %p53, %p54
    %p56 = scmp.ne.s32.totalorder %s45, %s48
    %p57 = scmp.eq.s32.totalorder %s14, 7
    %p58 = por %p56, %p57
    %p59 = scmp.ne.s32.totalorder %s48, %s49
    %p60 = scmp.eq.s32.totalorder %s14, 0
    %p61 = por %p59, %p60
    %p62 = scmp.ne.s32.totalorder %s48, %s49
    %p63 = scmp.eq.s32.totalorder %s15, 7
    %p64 = por %p62, %p63
    %p66 = scmp.ne.s32.totalorder %s49, %s65
    %p67 = scmp.eq.s32.totalorder %s15, 0
    %p68 = por %p66, %p67
    %s70 = sadd.s32 %s69, 1
    %p73 = scmp.eq.s32.totalorder %s9, 7
    %p74 = scmp.ne.s32.totalorder %s69, %s71
    %p75 = scmp.eq.s32.totalorder %s9, 0
    %p76 = por %p74, %p75
    %p77 = scmp.ne.s32.totalorder %s69, %s71
    %p78 = scmp.eq.s32.totalorder %s14, 7
    %p79 = por %p77, %p78
    %p80 = scmp.ne.s32.totalorder %s71, %s72
    %p81 = scmp.eq.s32.totalorder %s14, 0
    %p82 = por %p80, %p81
    %p83 = scmp.ne.s32.totalorder %s71, %s72
    %p84 = scmp.eq.s32.totalorder %s15, 7
    %p85 = por %p83, %p84
    %p87 = scmp.ne.s32.totalorder %s72, %s86
    %p88 = scmp.eq.s32.totalorder %s15, 0
    %p89 = por %p87, %p88
    %s90 = ssub.s32 %s9, %s16
    %p91 = scmp.eq.s32.totalorder %s90, 0
    %s93 = sadd.s32 %s92, 1
    %s94 = scalar_select %p91, %s92, %s93
    %p97 = pneg %p91
    %p98 = scmp.eq.s32.totalorder %s9, 7
    %p99 = por %p97, %p98
    %p100 = scmp.ne.s32.totalorder %s92, %s95
    %p101 = scmp.eq.s32.totalorder %s9, 0
    %p102 = por %p100, %p101
    %p103 = scmp.ne.s32.totalorder %s92, %s95
    %p104 = scmp.eq.s32.totalorder %s14, 7
    %p105 = por %p103, %p104
    %p106 = scmp.ne.s32.totalorder %s95, %s96
    %p107 = scmp.eq.s32.totalorder %s14, 0
    %p108 = por %p106, %p107
    %p109 = scmp.ne.s32.totalorder %s95, %s96
    %p110 = scmp.eq.s32.totalorder %s15, 7
    %p111 = por %p109, %p110
    %p113 = scmp.ne.s32.totalorder %s96, %s112
    %p114 = scmp.eq.s32.totalorder %s15, 0
    %p115 = por %p113, %p114
    %p116 = scmp.le.s32.totalorder 1, %s9
    %p117 = scmp.lt.s32.totalorder %s9, 9
    %p118 = pnand %p116, %p117
    %p119 = pneg %p118
    // Predicated region
    $region9: #{generator_forward.4} parent=5 // pred_check
      _
    $region10: #{generator_forward.4} parent=5 // pred_check_branch
      %121 = sbr.rel (%p118) target = $region12
    $region11: #{generator_forward.4} parent=5 // pred_region
      %s122 = ssub.s32 %s9, 1
      // Predicated region
      $region13: #{generator_forward.4} parent=11 // pred_check
        %p123 = pneg %p82
      $region14: #{generator_forward.4} parent=11 // pred_check_branch
        %125 = sbr.rel (%p123) target = $region16
      $region15: #{generator_forward.4} parent=11 // pred_region
        _
      $region16: #{generator_forward.4} parent=11 // pred_fallthru
        _
    $region12: #{generator_forward.4} parent=5 // pred_fallthru
      _
    %p126 = scmp.lt.s32.totalorder %s9, 8
    // Predicated region
    $region17: #{generator_forward.4} parent=5 // pred_check
      %p127 = pneg %p126
    $region18: #{generator_forward.4} parent=5 // pred_check_branch
      %129 = sbr.rel (%p127) target = $region20
    $region19: #{generator_forward.4} parent=5 // pred_region
      // Predicated region
      $region21: #{generator_forward.4} parent=19 // pred_check
        %p130 = pneg %p29
      $region22: #{generator_forward.4} parent=19 // pred_check_branch
        %132 = sbr.rel (%p130) target = $region24
      $region23: #{generator_forward.4} parent=19 // pred_region
        %p133 = scmp.lt.s32.totalorder %s9, 7
        %s134 = scalar_select %p133, %s9, 7
        %s135 = smul.addr %s134, 4
        %s136 = scalar_lea.vmem %s0, %s135
      $region24: #{generator_forward.4} parent=19 // pred_fallthru
        _
      // Predicated region
      $region25: #{generator_forward.4} parent=19 // pred_check
        %p137 = pneg %p55
      $region26: #{generator_forward.4} parent=19 // pred_check_branch
        %139 = sbr.rel (%p137) target = $region28
      $region27: #{generator_forward.4} parent=19 // pred_region
        %p140 = scmp.lt.s32.totalorder %s9, 7
        %s141 = scalar_select %p140, %s9, 7
        %s142 = smul.addr %s141, 16
        %s143 = smul.addr %s142, 4
        %s144 = scalar_lea.vmem %s1, %s143
      $region28: #{generator_forward.4} parent=19 // pred_fallthru
        _
    $region20: #{generator_forward.4} parent=5 // pred_fallthru
      _
    %p145 = scmp.le.s32.totalorder 1, %s9
    %p146 = scmp.lt.s32.totalorder %s9, 9
    %p147 = pnand %p145, %p146
    %p148 = pneg %p147
    // Predicated region
    $region29: #{generator_forward.4} parent=5 // pred_check
      _
    $region30: #{generator_forward.4} parent=5 // pred_check_branch
      %150 = sbr.rel (%p147) target = $region32
    $region31: #{generator_forward.4} parent=5 // pred_region
      %s151 = ssub.s32 %s9, 1
      %p152 = scmp.lt.s32.totalorder %s14, 7
      %s153 = scalar_select %p152, %s14, 7
      %s154 = smul.addr %s153, 4
      %s155 = scalar_lea.vmem %s0, %s154
      %p156 = pneg %p35
      %p157 = pneg %p32
      %p158 = scmp.lt.s32.totalorder %s14, 7
      %s159 = scalar_select %p158, %s14, 7
      %s160 = smul.addr %s159, 16
      %s161 = smul.addr %s160, 4
      %s162 = scalar_lea.vmem %s1, %s161
      %p163 = pneg %p61
      %p164 = pneg %p58
      %p165 = pneg %p82
      %p166 = pneg %p79
      %p167 = pneg %p108
      %p168 = pneg %p105
      %p169 = scmp.lt.s32.totalorder %s14, 7
      %s170 = scalar_select %p169, %s14, 7
      %s171 = smul.addr %s170, 8
      %s172 = scalar_lea.vmem %s3, %s171
      %p173 = scmp.lt.s32.totalorder %s14, 7
      %s174 = scalar_select %p173, %s14, 7
      %s175 = smul.addr %s174, 4
      %s176 = scalar_lea.vmem %s0, %s175
      %p177 = scmp.lt.s32.totalorder %s14, 7
      %s178 = scalar_select %p177, %s14, 7
      %s179 = smul.addr %s178, 16
      %s180 = smul.addr %s179, 4
      %s181 = scalar_lea.vmem %s1, %s180
      %p182 = scmp.lt.s32.totalorder %s14, 7
      %s183 = scalar_select %p182, %s14, 7
      %s184 = smul.addr %s183, 8
      %s185 = scalar_lea.vmem %s3, %s184
      %v187 = vld [vmem:[%s176] sm:$0xf]
      %v188 = vld [vmem:[%s181] sm:$0xf]
      %v189 = vld [vmem:[%s181 + $0x4] sm:$0xf]
      %v190 = vld [vmem:[%s181 + $0x8] sm:$0xf]
      %v191 = vld [vmem:[%s181 + $0xc] sm:$0xf]
      %v192 = vld [vmem:[%s181 + $0x10] sm:$0xf]
      %v193 = vld [vmem:[%s181 + $0x14] sm:$0xf]
      %v194 = vld [vmem:[%s181 + $0x18] sm:$0xf]
      %v195 = vld [vmem:[%s181 + $0x1c] sm:$0xf]
      %v196 = vld [vmem:[%s181 + $0x20] sm:$0xf]
      %v197 = vld [vmem:[%s181 + $0x24] sm:$0xf]
      %v198 = vld [vmem:[%s181 + $0x28] sm:$0xf]
      %v199 = vld [vmem:[%s181 + $0x2c] sm:$0xf]
      %v200 = vld [vmem:[%s181 + $0x30] sm:$0xf]
      %v201 = vld [vmem:[%s181 + $0x34] sm:$0xf]
      %v202 = vld [vmem:[%s181 + $0x38] sm:$0xf]
      %v203 = vld [vmem:[%s181 + $0x3c] sm:$0xf]
      %v204 = vld [vmem:[%s2] sm:$0xff]
      %206 = vset.pattern.permute.xlu0 0
      %207 = vperm.xlu0 %206, %v204
      %v208 = vpop.permute.xlu0 %207
      %v226 = vunpack.c.l.b16 %v188
      %v227 = vunpack.c.l.b16 %v189
      %v228 = vunpack.c.l.b16 %v190
      %v229 = vunpack.c.l.b16 %v191
      %v230 = vunpack.c.l.b16 %v192
      %v231 = vunpack.c.l.b16 %v193
      %v232 = vunpack.c.l.b16 %v194
      %v233 = vunpack.c.l.b16 %v195
      %v234 = vunpack.c.l.b16 %v196
      %v235 = vunpack.c.l.b16 %v197
      %v236 = vunpack.c.l.b16 %v198
      %v237 = vunpack.c.l.b16 %v199
      %v238 = vunpack.c.l.b16 %v200
      %v239 = vunpack.c.l.b16 %v201
      %v240 = vunpack.c.l.b16 %v202
      %v241 = vunpack.c.l.b16 %v203
      %v242 = vpack.c.b16 %v227, %v226
      %v243 = vpack.c.b16 %v229, %v228
      %v244 = vpack.c.b16 %v231, %v230
      %v245 = vpack.c.b16 %v233, %v232
      %v246 = vpack.c.b16 %v235, %v234
      %v247 = vpack.c.b16 %v237, %v236
      %v248 = vpack.c.b16 %v239, %v238
      %v249 = vpack.c.b16 %v241, %v240
      %258 = vmatprep.subr.bf16.mxu0 0
      %259 = vmatpush1.bf16.msra.mxu0 %v249
      %260 = vmatprep.subr.bf16.mxu0 0
      %261 = vmatpush1.bf16.msra.mxu0 %v248
      %262 = vmatprep.subr.bf16.mxu0 0
      %263 = vmatpush1.bf16.msra.mxu0 %v247
      %264 = vmatprep.subr.bf16.mxu0 0
      %265 = vmatpush1.bf16.msra.mxu0 %v246
      %266 = vmatprep.subr.bf16.mxu0 0
      %267 = vmatpush1.bf16.msra.mxu0 %v245
      %268 = vmatprep.subr.bf16.mxu0 0
      %269 = vmatpush1.bf16.msra.mxu0 %v244
      %270 = vmatprep.subr.bf16.mxu0 0
      %271 = vmatpush1.bf16.msra.mxu0 %v243
      %272 = vmatprep.subr.bf16.mxu0 0
      %273 = vmatpush1.bf16.msra.mxu0 %v242
      %274 = vmatprep.subr.bf16.mxu0 0
      %275 = vmatpush2.bf16.msra.mxu0 0
      %276 = vmatprep.subr.bf16.mxu0 0
      %277 = vmatpush2.bf16.msra.mxu0 0
      %278 = vmatprep.subr.bf16.mxu0 0
      %279 = vmatpush2.bf16.msra.mxu0 0
      %280 = vmatprep.subr.bf16.mxu0 0
      %281 = vmatpush2.bf16.msra.mxu0 0
      %282 = vmatprep.subr.bf16.mxu0 0
      %283 = vmatpush2.bf16.msra.mxu0 0
      %284 = vmatprep.subr.bf16.mxu0 0
      %285 = vmatpush2.bf16.msra.mxu0 0
      %286 = vmatprep.subr.bf16.mxu0 0
      %287 = vmatpush2.bf16.msra.mxu0 0
      %288 = vmatprep.subr.bf16.mxu0 0
      %289 = vmatpush2.bf16.msra.mxu0 0
      %290 = vmatprep.mubr.bf16.mxu0 0
      %291 = vmatmul.mubr.bf16.gmra.mxu0 %v187
      %v292 = vpop.f32.mrf.mxu0
      %v293 = vadd.f32 %v208, %v292
      %v294 = vpop.f32.mrf.mxu0
      %v295 = vpop.f32.mrf.mxu0
      %v296 = vpop.f32.mrf.mxu0
      %297 = vdwg.mxu0
      %v298 = vmax.f32 %v293, 0.0
      %299 = vst [vmem:[%s185] sm:$0xff] %v298
      %p300 = scmp.lt.s32.totalorder %s14, 7
      %s301 = scalar_select %p300, %s14, 7
      %s302 = smul.addr %s301, 8
      %s303 = scalar_lea.vmem %s3, %s302
      // Predicated region
      $region33: #{generator_forward.4} parent=31 // pred_check
        %p304 = pneg %p105
      $region34: #{generator_forward.4} parent=31 // pred_check_branch
        %306 = sbr.rel (%p304) target = $region36
      $region35: #{generator_forward.4} parent=31 // pred_region
        _
      $region36: #{generator_forward.4} parent=31 // pred_fallthru
        _
    $region32: #{generator_forward.4} parent=5 // pred_fallthru
      _
    %p307 = scmp.le.s32.totalorder 2, %s9
    // Predicated region
    $region37: #{generator_forward.4} parent=5 // pred_check
      %p308 = pneg %p307
    $region38: #{generator_forward.4} parent=5 // pred_check_branch
      %310 = sbr.rel (%p308) target = $region40
    $region39: #{generator_forward.4} parent=5 // pred_region
      %s311 = ssub.s32 %s9, 2
      // Predicated region
      $region41: #{generator_forward.4} parent=39 // pred_check
        %p312 = pneg %p111
      $region42: #{generator_forward.4} parent=39 // pred_check_branch
        %314 = sbr.rel (%p312) target = $region44
      $region43: #{generator_forward.4} parent=39 // pred_region
        %p315 = scmp.lt.s32.totalorder %s15, 7
        %s316 = scalar_select %p315, %s15, 7
        %s317 = smul.addr %s316, 8
        %s318 = scalar_lea.vmem %s3, %s317
      $region44: #{generator_forward.4} parent=39 // pred_fallthru
        _
    $region40: #{generator_forward.4} parent=5 // pred_fallthru
      _
  $region6: #{generator_forward.4} parent=0 // loop_footer
    %s13 = sadd.s32 1, %s9
  $region7: #{generator_forward.4} parent=0 // loop_footer_branch
    %8 = sbr.rel target = $region3
  $region8: #{generator_forward.4} parent=0 // loop_exit
    _

// kernel: generator_forward.5
$region0: #{generator_forward.5}
  #allocation0 [shape = 'u32[]', space=smem, size = 0x4, offset = 0x4, fixed_abs, tag = 'smem constant byte address 0x4 - core index']
  #allocation1 [shape = 'u32[144,128]{1,0:T(1,128)}', space=vmem, size = 0x12000, scoped, tag = 'internal scratch']
  #allocation2 [shape = 'f32[1,1,1]{2,1,0:T(1,128)S(1)}', space=vmem, size = 0x200, scoped, tag = 'scoped memory for generator_forward.5']
  %s0 = inlined_call_operand.vmem [shape: bf16[8,1,64], index: 0, kind: input, shape index: {}]
  %s1 = inlined_call_operand.vmem [shape: bf16[8,64,1024], index: 1, kind: input, shape index: {}]
  %s2 = inlined_call_operand.<no memory space> [shape: f32[1,1,1], index: 2, kind: input, shape index: {}]
  %s3 = inlined_call_operand.vmem [shape: f32[8,1,1024], index: 3, kind: output, shape index: {}]
  %s4 = sld [smem:[#allocation0]]
  $region45: #{generator_forward.5} parent=0
    _
  %s6 = ssub.s32 1, %s4
  %s7 = scalar_select 0, %s6, %s4
  %v8 = vstv %s2
  %9 = vst [vmem:[#allocation2] sm:$0x1] %v8
  loop: start=0, step=1, limit=10
  $region2: #{generator_forward.5} parent=0 // loop_pre_header
    _
  $region3: #{generator_forward.5} parent=0 // loop_header
    %s11 = sphi 0, %s15
    %p12 = scmp.ge.s32.totalorder %s11, 10
    %s21 = sphi 0, %s23
    %s24 = sphi 0, %s21
    %s25 = sphi 0, %s24
    %s41 = sphi 0, %s25
    %s47 = sphi 0, %s49
    %s50 = sphi 0, %s47
    %s51 = sphi 0, %s50
    %s67 = sphi 0, %s51
    %s71 = sphi 0, %s71
    %s73 = sphi 0, %s71
    %s74 = sphi 0, %s73
    %s88 = sphi 0, %s74
    %s94 = sphi 0, %s96
    %s97 = sphi 0, %s94
    %s98 = sphi 0, %s97
    %s114 = sphi 0, %s98
  $region4: #{generator_forward.5} parent=0 // loop_header_branch
    %14 = sbr.rel (%p12) target = $region8
  $region5: #{generator_forward.5} parent=0 // loop_body
    %s16 = ssub.s32 %s11, 1
    %s17 = ssub.s32 %s11, 2
    %s18 = sadd.s32 %s11, 1
    %s19 = ssub.s32 %s11, %s18
    %p20 = scmp.eq.s32.totalorder %s19, 0
    %s22 = sadd.s32 %s21, 1
    %s23 = scalar_select %p20, %s21, %s22
    %p26 = pneg %p20
    %p27 = scmp.eq.s32.totalorder %s11, 7
    %p28 = por %p26, %p27
    %p29 = scmp.ne.s32.totalorder %s21, %s24
    %p30 = scmp.eq.s32.totalorder %s11, 0
    %p31 = por %p29, %p30
    %p32 = scmp.ne.s32.totalorder %s21, %s24
    %p33 = scmp.eq.s32.totalorder %s16, 7
    %p34 = por %p32, %p33
    %p35 = scmp.ne.s32.totalorder %s24, %s25
    %p36 = scmp.eq.s32.totalorder %s16, 0
    %p37 = por %p35, %p36
    %p38 = scmp.ne.s32.totalorder %s24, %s25
    %p39 = scmp.eq.s32.totalorder %s17, 7
    %p40 = por %p38, %p39
    %p42 = scmp.ne.s32.totalorder %s25, %s41
    %p43 = scmp.eq.s32.totalorder %s17, 0
    %p44 = por %p42, %p43
    %s45 = ssub.s32 %s11, %s18
    %p46 = scmp.eq.s32.totalorder %s45, 0
    %s48 = sadd.s32 %s47, 1
    %s49 = scalar_select %p46, %s47, %s48
    %p52 = pneg %p46
    %p53 = scmp.eq.s32.totalorder %s11, 7
    %p54 = por %p52, %p53
    %p55 = scmp.ne.s32.totalorder %s47, %s50
    %p56 = scmp.eq.s32.totalorder %s11, 0
    %p57 = por %p55, %p56
    %p58 = scmp.ne.s32.totalorder %s47, %s50
    %p59 = scmp.eq.s32.totalorder %s16, 7
    %p60 = por %p58, %p59
    %p61 = scmp.ne.s32.totalorder %s50, %s51
    %p62 = scmp.eq.s32.totalorder %s16, 0
    %p63 = por %p61, %p62
    %p64 = scmp.ne.s32.totalorder %s50, %s51
    %p65 = scmp.eq.s32.totalorder %s17, 7
    %p66 = por %p64, %p65
    %p68 = scmp.ne.s32.totalorder %s51, %s67
    %p69 = scmp.eq.s32.totalorder %s17, 0
    %p70 = por %p68, %p69
    %s72 = sadd.s32 %s71, 1
    %p75 = scmp.eq.s32.totalorder %s11, 7
    %p76 = scmp.ne.s32.totalorder %s71, %s73
    %p77 = scmp.eq.s32.totalorder %s11, 0
    %p78 = por %p76, %p77
    %p79 = scmp.ne.s32.totalorder %s71, %s73
    %p80 = scmp.eq.s32.totalorder %s16, 7
    %p81 = por %p79, %p80
    %p82 = scmp.ne.s32.totalorder %s73, %s74
    %p83 = scmp.eq.s32.totalorder %s16, 0
    %p84 = por %p82, %p83
    %p85 = scmp.ne.s32.totalorder %s73, %s74
    %p86 = scmp.eq.s32.totalorder %s17, 7
    %p87 = por %p85, %p86
    %p89 = scmp.ne.s32.totalorder %s74, %s88
    %p90 = scmp.eq.s32.totalorder %s17, 0
    %p91 = por %p89, %p90
    %s92 = ssub.s32 %s11, %s18
    %p93 = scmp.eq.s32.totalorder %s92, 0
    %s95 = sadd.s32 %s94, 1
    %s96 = scalar_select %p93, %s94, %s95
    %p99 = pneg %p93
    %p100 = scmp.eq.s32.totalorder %s11, 7
    %p101 = por %p99, %p100
    %p102 = scmp.ne.s32.totalorder %s94, %s97
    %p103 = scmp.eq.s32.totalorder %s11, 0
    %p104 = por %p102, %p103
    %p105 = scmp.ne.s32.totalorder %s94, %s97
    %p106 = scmp.eq.s32.totalorder %s16, 7
    %p107 = por %p105, %p106
    %p108 = scmp.ne.s32.totalorder %s97, %s98
    %p109 = scmp.eq.s32.totalorder %s16, 0
    %p110 = por %p108, %p109
    %p111 = scmp.ne.s32.totalorder %s97, %s98
    %p112 = scmp.eq.s32.totalorder %s17, 7
    %p113 = por %p111, %p112
    %p115 = scmp.ne.s32.totalorder %s98, %s114
    %p116 = scmp.eq.s32.totalorder %s17, 0
    %p117 = por %p115, %p116
    %p118 = scmp.le.s32.totalorder 1, %s11
    %p119 = scmp.lt.s32.totalorder %s11, 9
    %p120 = pnand %p118, %p119
    %p121 = pneg %p120
    // Predicated region
    $region9: #{generator_forward.5} parent=5 // pred_check
      _
    $region10: #{generator_forward.5} parent=5 // pred_check_branch
      %123 = sbr.rel (%p120) target = $region12
    $region11: #{generator_forward.5} parent=5 // pred_region
      %s124 = ssub.s32 %s11, 1
      // Predicated region
      $region13: #{generator_forward.5} parent=11 // pred_check
        %p125 = pneg %p84
      $region14: #{generator_forward.5} parent=11 // pred_check_branch
        %127 = sbr.rel (%p125) target = $region16
      $region15: #{generator_forward.5} parent=11 // pred_region
        _
      $region16: #{generator_forward.5} parent=11 // pred_fallthru
        _
    $region12: #{generator_forward.5} parent=5 // pred_fallthru
      _
    %p128 = scmp.lt.s32.totalorder %s11, 8
    // Predicated region
    $region17: #{generator_forward.5} parent=5 // pred_check
      %p129 = pneg %p128
    $region18: #{generator_forward.5} parent=5 // pred_check_branch
      %131 = sbr.rel (%p129) target = $region20
    $region19: #{generator_forward.5} parent=5 // pred_region
      // Predicated region
      $region21: #{generator_forward.5} parent=19 // pred_check
        %p132 = pneg %p31
      $region22: #{generator_forward.5} parent=19 // pred_check_branch
        %134 = sbr.rel (%p132) target = $region24
      $region23: #{generator_forward.5} parent=19 // pred_region
        %p135 = scmp.lt.s32.totalorder %s11, 7
        %s136 = scalar_select %p135, %s11, 7
        %s137 = scalar_lea.vmem %s0, %s136
      $region24: #{generator_forward.5} parent=19 // pred_fallthru
        _
      // Predicated region
      $region25: #{generator_forward.5} parent=19 // pred_check
        %p138 = pneg %p57
      $region26: #{generator_forward.5} parent=19 // pred_check_branch
        %140 = sbr.rel (%p138) target = $region28
      $region27: #{generator_forward.5} parent=19 // pred_region
        %p141 = scmp.lt.s32.totalorder %s11, 7
        %s142 = scalar_select %p141, %s11, 7
        %s143 = smul.addr %s142, 64
        %s144 = smul.addr %s143, 4
        %s145 = scalar_lea.vmem %s1, %s144
      $region28: #{generator_forward.5} parent=19 // pred_fallthru
        _
    $region20: #{generator_forward.5} parent=5 // pred_fallthru
      _
    %p146 = scmp.le.s32.totalorder 1, %s11
    %p147 = scmp.lt.s32.totalorder %s11, 9
    %p148 = pnand %p146, %p147
    %p149 = pneg %p148
    // Predicated region
    $region29: #{generator_forward.5} parent=5 // pred_check
      _
    $region30: #{generator_forward.5} parent=5 // pred_check_branch
      %151 = sbr.rel (%p148) target = $region32
    $region31: #{generator_forward.5} parent=5 // pred_region
      %s152 = ssub.s32 %s11, 1
      %p153 = scmp.lt.s32.totalorder %s16, 7
      %s154 = scalar_select %p153, %s16, 7
      %s155 = scalar_lea.vmem %s0, %s154
      %p156 = pneg %p37
      %p157 = pneg %p34
      %p158 = scmp.lt.s32.totalorder %s16, 7
      %s159 = scalar_select %p158, %s16, 7
      %s160 = smul.addr %s159, 64
      %s161 = smul.addr %s160, 4
      %s162 = scalar_lea.vmem %s1, %s161
      %p163 = pneg %p63
      %p164 = pneg %p60
      %p165 = pneg %p84
      %p166 = pneg %p81
      %p167 = pneg %p110
      %p168 = pneg %p107
      %p169 = scmp.lt.s32.totalorder %s16, 7
      %s170 = scalar_select %p169, %s16, 7
      %s171 = smul.addr %s170, 8
      %s172 = scalar_lea.vmem %s3, %s171
      %p173 = scmp.lt.s32.totalorder %s16, 7
      %s174 = scalar_select %p173, %s16, 7
      %s175 = scalar_lea.vmem %s0, %s174
      %p176 = scmp.lt.s32.totalorder %s16, 7
      %s177 = scalar_select %p176, %s16, 7
      %s178 = smul.addr %s177, 64
      %s179 = smul.addr %s178, 4
      %s180 = scalar_lea.vmem %s1, %s179
      %p181 = scmp.lt.s32.totalorder %s16, 7
      %s182 = scalar_select %p181, %s16, 7
      %s183 = smul.addr %s182, 8
      %s184 = scalar_lea.vmem %s3, %s183
      %v186 = vld [vmem:[%s175] sm:$0x1]
      %v187 = vld [vmem:[%s180] sm:$0xff]
      %v188 = vld [vmem:[%s180 + $0x8] sm:$0xff]
      %v189 = vld [vmem:[%s180 + $0x10] sm:$0xff]
      %v190 = vld [vmem:[%s180 + $0x18] sm:$0xff]
      %v191 = vld [vmem:[%s180 + $0x20] sm:$0xff]
      %v192 = vld [vmem:[%s180 + $0x28] sm:$0xff]
      %v193 = vld [vmem:[%s180 + $0x30] sm:$0xff]
      %v194 = vld [vmem:[%s180 + $0x38] sm:$0xff]
      %v195 = vld [vmem:[%s180 + $0x40] sm:$0xff]
      %v196 = vld [vmem:[%s180 + $0x48] sm:$0xff]
      %v197 = vld [vmem:[%s180 + $0x50] sm:$0xff]
      %v198 = vld [vmem:[%s180 + $0x58] sm:$0xff]
      %v199 = vld [vmem:[%s180 + $0x60] sm:$0xff]
      %v200 = vld [vmem:[%s180 + $0x68] sm:$0xff]
      %v201 = vld [vmem:[%s180 + $0x70] sm:$0xff]
      %v202 = vld [vmem:[%s180 + $0x78] sm:$0xff]
      %v203 = vld [vmem:[%s180 + $0x80] sm:$0xff]
      %v204 = vld [vmem:[%s180 + $0x88] sm:$0xff]
      %v205 = vld [vmem:[%s180 + $0x90] sm:$0xff]
      %v206 = vld [vmem:[%s180 + $0x98] sm:$0xff]
      %v207 = vld [vmem:[%s180 + $0xa0] sm:$0xff]
      %v208 = vld [vmem:[%s180 + $0xa8] sm:$0xff]
      %v209 = vld [vmem:[%s180 + $0xb0] sm:$0xff]
      %v210 = vld [vmem:[%s180 + $0xb8] sm:$0xff]
      %v211 = vld [vmem:[%s180 + $0xc0] sm:$0xff]
      %v212 = vld [vmem:[%s180 + $0xc8] sm:$0xff]
      %v213 = vld [vmem:[%s180 + $0xd0] sm:$0xff]
      %v214 = vld [vmem:[%s180 + $0xd8] sm:$0xff]
      %v215 = vld [vmem:[%s180 + $0xe0] sm:$0xff]
      %v216 = vld [vmem:[%s180 + $0xe8] sm:$0xff]
      %v217 = vld [vmem:[%s180 + $0xf0] sm:$0xff]
      %v218 = vld [vmem:[%s180 + $0xf8] sm:$0xff]
      %v219 = vld [vmem:[#allocation2] sm:$0x1]
      %221 = vset.pattern.permute.xlu0 0
      %222 = vperm.xlu0 %221, %v219
      %v223 = vpop.permute.xlu0 %222
      %v225 = vlaneseq
      %v226 = vshrl.u32 %v225, 7
      %v227 = vsub.s32 0, %v226
      %v228 = vrot.slane %v223, %v227
      %v261 = vunpack.c.l.b16 %v187
      %v262 = vunpack.c.h.b16 %v187
      %v263 = vunpack.c.l.b16 %v188
      %v264 = vunpack.c.h.b16 %v188
      %v265 = vunpack.c.l.b16 %v189
      %v266 = vunpack.c.h.b16 %v189
      %v267 = vunpack.c.l.b16 %v190
      %v268 = vunpack.c.h.b16 %v190
      %v269 = vunpack.c.l.b16 %v191
      %v270 = vunpack.c.h.b16 %v191
      %v271 = vunpack.c.l.b16 %v192
      %v272 = vunpack.c.h.b16 %v192
      %v273 = vunpack.c.l.b16 %v193
      %v274 = vunpack.c.h.b16 %v193
      %v275 = vunpack.c.l.b16 %v194
      %v276 = vunpack.c.h.b16 %v194
      %v277 = vunpack.c.l.b16 %v195
      %v278 = vunpack.c.h.b16 %v195
      %v279 = vunpack.c.l.b16 %v196
      %v280 = vunpack.c.h.b16 %v196
      %v281 = vunpack.c.l.b16 %v197
      %v282 = vunpack.c.h.b16 %v197
      %v283 = vunpack.c.l.b16 %v198
      %v284 = vunpack.c.h.b16 %v198
      %v285 = vunpack.c.l.b16 %v199
      %v286 = vunpack.c.h.b16 %v199
      %v287 = vunpack.c.l.b16 %v200
      %v288 = vunpack.c.h.b16 %v200
      %v289 = vunpack.c.l.b16 %v201
      %v290 = vunpack.c.h.b16 %v201
      %v291 = vunpack.c.l.b16 %v202
      %v292 = vunpack.c.h.b16 %v202
      %v293 = vunpack.c.l.b16 %v203
      %v294 = vunpack.c.h.b16 %v203
      %v295 = vunpack.c.l.b16 %v204
      %v296 = vunpack.c.h.b16 %v204
      %v297 = vunpack.c.l.b16 %v205
      %v298 = vunpack.c.h.b16 %v205
      %v299 = vunpack.c.l.b16 %v206
      %v300 = vunpack.c.h.b16 %v206
      %v301 = vunpack.c.l.b16 %v207
      %v302 = vunpack.c.h.b16 %v207
      %v303 = vunpack.c.l.b16 %v208
      %v304 = vunpack.c.h.b16 %v208
      %v305 = vunpack.c.l.b16 %v209
      %v306 = vunpack.c.h.b16 %v209
      %v307 = vunpack.c.l.b16 %v210
      %v308 = vunpack.c.h.b16 %v210
      %v309 = vunpack.c.l.b16 %v211
      %v310 = vunpack.c.h.b16 %v211
      %v311 = vunpack.c.l.b16 %v212
      %v312 = vunpack.c.h.b16 %v212
      %v313 = vunpack.c.l.b16 %v213
      %v314 = vunpack.c.h.b16 %v213
      %v315 = vunpack.c.l.b16 %v214
      %v316 = vunpack.c.h.b16 %v214
      %v317 = vunpack.c.l.b16 %v215
      %v318 = vunpack.c.h.b16 %v215
      %v319 = vunpack.c.l.b16 %v216
      %v320 = vunpack.c.h.b16 %v216
      %v321 = vunpack.c.l.b16 %v217
      %v322 = vunpack.c.h.b16 %v217
      %v323 = vunpack.c.l.b16 %v218
      %v324 = vunpack.c.h.b16 %v218
      %v325 = vpack.c.b16 %v269, %v261
      %v326 = vpack.c.b16 %v270, %v262
      %v327 = vpack.c.b16 %v271, %v263
      %v328 = vpack.c.b16 %v272, %v264
      %v329 = vpack.c.b16 %v273, %v265
      %v330 = vpack.c.b16 %v274, %v266
      %v331 = vpack.c.b16 %v275, %v267
      %v332 = vpack.c.b16 %v276, %v268
      %v333 = vpack.c.b16 %v285, %v277
      %v334 = vpack.c.b16 %v286, %v278
      %v335 = vpack.c.b16 %v287, %v279
      %v336 = vpack.c.b16 %v288, %v280
      %v337 = vpack.c.b16 %v289, %v281
      %v338 = vpack.c.b16 %v290, %v282
      %v339 = vpack.c.b16 %v291, %v283
      %v340 = vpack.c.b16 %v292, %v284
      %v341 = vpack.c.b16 %v301, %v293
      %v342 = vpack.c.b16 %v302, %v294
      %v343 = vpack.c.b16 %v303, %v295
      %v344 = vpack.c.b16 %v304, %v296
      %v345 = vpack.c.b16 %v305, %v297
      %v346 = vpack.c.b16 %v306, %v298
      %v347 = vpack.c.b16 %v307, %v299
      %v348 = vpack.c.b16 %v308, %v300
      %v349 = vpack.c.b16 %v317, %v309
      %v350 = vpack.c.b16 %v318, %v310
      %v351 = vpack.c.b16 %v319, %v311
      %v352 = vpack.c.b16 %v320, %v312
      %v353 = vpack.c.b16 %v321, %v313
      %v354 = vpack.c.b16 %v322, %v314
      %v355 = vpack.c.b16 %v323, %v315
      %v356 = vpack.c.b16 %v324, %v316
      %vm389 = vcmask 523264
      %v391 = vsel %vm389, %v186, 0
      %393 = vmatprep.subr.bf16.mxu0 0
      %394 = vmatpush1.bf16.msra.mxu0 0
      %395 = vmatprep.subr.bf16.mxu0 0
      %396 = vmatpush1.bf16.msra.mxu0 0
      %397 = vmatprep.subr.bf16.mxu0 0
      %398 = vmatpush1.bf16.msra.mxu0 0
      %399 = vmatprep.subr.bf16.mxu0 0
      %400 = vmatpush1.bf16.msra.mxu0 0
      %401 = vmatprep.subr.bf16.mxu0 %v350
      %402 = vmatpush1.bf16.msra.mxu0 %v349
      %403 = vmatprep.subr.bf16.mxu0 %v342
      %404 = vmatpush1.bf16.msra.mxu0 %v341
      %405 = vmatprep.subr.bf16.mxu0 %v334
      %406 = vmatpush1.bf16.msra.mxu0 %v333
      %407 = vmatprep.subr.bf16.mxu0 %v326
      %408 = vmatpush1.bf16.msra.mxu0 %v325
      %409 = vmatprep.subr.bf16.mxu0 0
      %410 = vmatpush2.bf16.msra.mxu0 0
      %411 = vmatprep.subr.bf16.mxu0 0
      %412 = vmatpush2.bf16.msra.mxu0 0
      %413 = vmatprep.subr.bf16.mxu0 0
      %414 = vmatpush2.bf16.msra.mxu0 0
      %415 = vmatprep.subr.bf16.mxu0 0
      %416 = vmatpush2.bf16.msra.mxu0 0
      %417 = vmatprep.subr.bf16.mxu0 0
      %418 = vmatpush2.bf16.msra.mxu0 0
      %419 = vmatprep.subr.bf16.mxu0 0
      %420 = vmatpush2.bf16.msra.mxu0 0
      %421 = vmatprep.subr.bf16.mxu0 0
      %422 = vmatpush2.bf16.msra.mxu0 0
      %423 = vmatprep.subr.bf16.mxu0 0
      %424 = vmatpush2.bf16.msra.mxu0 0
      %425 = vmatprep.mubr.bf16.mxu0 0
      %426 = vmatmul.mubr.bf16.gmra.mxu0 %v391
      %v427 = vpop.f32.mrf.mxu0
      %v428 = vadd.f32 %v228, %v427
      %v429 = vpop.f32.mrf.mxu0
      %v430 = vadd.f32 %v228, %v429
      %v431 = vpop.f32.mrf.mxu0
      %v432 = vpop.f32.mrf.mxu0
      %433 = vdwg.mxu0
      %434 = vmatprep.subr.bf16.mxu0 0
      %435 = vmatpush1.bf16.msra.mxu0 0
      %436 = vmatprep.subr.bf16.mxu0 0
      %437 = vmatpush1.bf16.msra.mxu0 0
      %438 = vmatprep.subr.bf16.mxu0 0
      %439 = vmatpush1.bf16.msra.mxu0 0
      %440 = vmatprep.subr.bf16.mxu0 0
      %441 = vmatpush1.bf16.msra.mxu0 0
      %442 = vmatprep.subr.bf16.mxu0 %v352
      %443 = vmatpush1.bf16.msra.mxu0 %v351
      %444 = vmatprep.subr.bf16.mxu0 %v344
      %445 = vmatpush1.bf16.msra.mxu0 %v343
      %446 = vmatprep.subr.bf16.mxu0 %v336
      %447 = vmatpush1.bf16.msra.mxu0 %v335
      %448 = vmatprep.subr.bf16.mxu0 %v328
      %449 = vmatpush1.bf16.msra.mxu0 %v327
      %450 = vmatprep.subr.bf16.mxu0 0
      %451 = vmatpush2.bf16.msra.mxu0 0
      %452 = vmatprep.subr.bf16.mxu0 0
      %453 = vmatpush2.bf16.msra.mxu0 0
      %454 = vmatprep.subr.bf16.mxu0 0
      %455 = vmatpush2.bf16.msra.mxu0 0
      %456 = vmatprep.subr.bf16.mxu0 0
      %457 = vmatpush2.bf16.msra.mxu0 0
      %458 = vmatprep.subr.bf16.mxu0 0
      %459 = vmatpush2.bf16.msra.mxu0 0
      %460 = vmatprep.subr.bf16.mxu0 0
      %461 = vmatpush2.bf16.msra.mxu0 0
      %462 = vmatprep.subr.bf16.mxu0 0
      %463 = vmatpush2.bf16.msra.mxu0 0
      %464 = vmatprep.subr.bf16.mxu0 0
      %465 = vmatpush2.bf16.msra.mxu0 0
      %466 = vmatprep.mubr.bf16.mxu0 0
      %467 = vmatmul.mubr.bf16.gmra.mxu0 %v391
      %v468 = vpop.f32.mrf.mxu0
      %v469 = vadd.f32 %v228, %v468
      %v470 = vpop.f32.mrf.mxu0
      %v471 = vadd.f32 %v228, %v470
      %v472 = vpop.f32.mrf.mxu0
      %v473 = vpop.f32.mrf.mxu0
      %474 = vdwg.mxu0
      %475 = vmatprep.subr.bf16.mxu0 0
      %476 = vmatpush1.bf16.msra.mxu0 0
      %477 = vmatprep.subr.bf16.mxu0 0
      %478 = vmatpush1.bf16.msra.mxu0 0
      %479 = vmatprep.subr.bf16.mxu0 0
      %480 = vmatpush1.bf16.msra.mxu0 0
      %481 = vmatprep.subr.bf16.mxu0 0
      %482 = vmatpush1.bf16.msra.mxu0 0
      %483 = vmatprep.subr.bf16.mxu0 %v354
      %484 = vmatpush1.bf16.msra.mxu0 %v353
      %485 = vmatprep.subr.bf16.mxu0 %v346
      %486 = vmatpush1.bf16.msra.mxu0 %v345
      %487 = vmatprep.subr.bf16.mxu0 %v338
      %488 = vmatpush1.bf16.msra.mxu0 %v337
      %489 = vmatprep.subr.bf16.mxu0 %v330
      %490 = vmatpush1.bf16.msra.mxu0 %v329
      %491 = vmatprep.subr.bf16.mxu0 0
      %492 = vmatpush2.bf16.msra.mxu0 0
      %493 = vmatprep.subr.bf16.mxu0 0
      %494 = vmatpush2.bf16.msra.mxu0 0
      %495 = vmatprep.subr.bf16.mxu0 0
      %496 = vmatpush2.bf16.msra.mxu0 0
      %497 = vmatprep.subr.bf16.mxu0 0
      %498 = vmatpush2.bf16.msra.mxu0 0
      %499 = vmatprep.subr.bf16.mxu0 0
      %500 = vmatpush2.bf16.msra.mxu0 0
      %501 = vmatprep.subr.bf16.mxu0 0
      %502 = vmatpush2.bf16.msra.mxu0 0
      %503 = vmatprep.subr.bf16.mxu0 0
      %504 = vmatpush2.bf16.msra.mxu0 0
      %505 = vmatprep.subr.bf16.mxu0 0
      %506 = vmatpush2.bf16.msra.mxu0 0
      %507 = vmatprep.mubr.bf16.mxu0 0
      %508 = vmatmul.mubr.bf16.gmra.mxu0 %v391
      %v509 = vpop.f32.mrf.mxu0
      %v510 = vadd.f32 %v228, %v509
      %v511 = vpop.f32.mrf.mxu0
      %v512 = vadd.f32 %v228, %v511
      %v513 = vpop.f32.mrf.mxu0
      %v514 = vpop.f32.mrf.mxu0
      %515 = vdwg.mxu0
      %516 = vmatprep.subr.bf16.mxu0 0
      %517 = vmatpush1.bf16.msra.mxu0 0
      %518 = vmatprep.subr.bf16.mxu0 0
      %519 = vmatpush1.bf16.msra.mxu0 0
      %520 = vmatprep.subr.bf16.mxu0 0
      %521 = vmatpush1.bf16.msra.mxu0 0
      %522 = vmatprep.subr.bf16.mxu0 0
      %523 = vmatpush1.bf16.msra.mxu0 0
      %524 = vmatprep.subr.bf16.mxu0 %v356
      %525 = vmatpush1.bf16.msra.mxu0 %v355
      %526 = vmatprep.subr.bf16.mxu0 %v348
      %527 = vmatpush1.bf16.msra.mxu0 %v347
      %528 = vmatprep.subr.bf16.mxu0 %v340
      %529 = vmatpush1.bf16.msra.mxu0 %v339
      %530 = vmatprep.subr.bf16.mxu0 %v332
      %531 = vmatpush1.bf16.msra.mxu0 %v331
      %532 = vmatprep.subr.bf16.mxu0 0
      %533 = vmatpush2.bf16.msra.mxu0 0
      %534 = vmatprep.subr.bf16.mxu0 0
      %535 = vmatpush2.bf16.msra.mxu0 0
      %536 = vmatprep.subr.bf16.mxu0 0
      %537 = vmatpush2.bf16.msra.mxu0 0
      %538 = vmatprep.subr.bf16.mxu0 0
      %539 = vmatpush2.bf16.msra.mxu0 0
      %540 = vmatprep.subr.bf16.mxu0 0
      %541 = vmatpush2.bf16.msra.mxu0 0
      %542 = vmatprep.subr.bf16.mxu0 0
      %543 = vmatpush2.bf16.msra.mxu0 0
      %544 = vmatprep.subr.bf16.mxu0 0
      %545 = vmatpush2.bf16.msra.mxu0 0
      %546 = vmatprep.subr.bf16.mxu0 0
      %547 = vmatpush2.bf16.msra.mxu0 0
      %548 = vmatprep.mubr.bf16.mxu0 0
      %549 = vmatmul.mubr.bf16.gmra.mxu0 %v391
      %v550 = vpop.f32.mrf.mxu0
      %v551 = vadd.f32 %v228, %v550
      %v552 = vpop.f32.mrf.mxu0
      %v553 = vadd.f32 %v228, %v552
      %v554 = vpop.f32.mrf.mxu0
      %v555 = vpop.f32.mrf.mxu0
      %556 = vdwg.mxu0
      %v557 = vtanh.pop %v428
      %v558 = vtanh.pop %v430
      %v559 = vtanh.pop %v469
      %v560 = vtanh.pop %v471
      %v561 = vtanh.pop %v510
      %v562 = vtanh.pop %v512
      %v563 = vtanh.pop %v551
      %v564 = vtanh.pop %v553
      %v573 = vcombine.low %v557, %v558
      %v574 = vcombine.low %v559, %v560
      %v575 = vcombine.low %v561, %v562
      %v576 = vcombine.low %v563, %v564
      %v578 = vunpack.c.l.s4 1966171168
      %v579 = vunpack.c.0.s8 %v578
      %v580 = vlaneseq
      %v581 = vshrl.u32 %v580, 7
      %v582 = vsub.s32 %v579, %v581
      %v583 = vrot.slane %v573, %v582
      %v585 = vunpack.c.l.s4 1966171168
      %v586 = vunpack.c.0.s8 %v585
      %v587 = vlaneseq
      %v588 = vshrl.u32 %v587, 7
      %v589 = vsub.s32 %v586, %v588
      %v590 = vrot.slane %v574, %v589
      %v592 = vunpack.c.l.s4 1966171168
      %v593 = vunpack.c.0.s8 %v592
      %v594 = vlaneseq
      %v595 = vshrl.u32 %v594, 7
      %v596 = vsub.s32 %v593, %v595
      %v597 = vrot.slane %v575, %v596
      %v599 = vunpack.c.l.s4 1966171168
      %v600 = vunpack.c.0.s8 %v599
      %v601 = vlaneseq
      %v602 = vshrl.u32 %v601, 7
      %v603 = vsub.s32 %v600, %v602
      %v604 = vrot.slane %v576, %v603
      %v605 = vcombine.low %v583, %v590
      %v606 = vcombine.low %v597, %v604
      %v608 = vunpack.c.l.s4 1966171168
      %v609 = vunpack.c.0.s8 %v608
      %v610 = vlaneseq
      %v611 = vshrl.u32 %v610, 7
      %v612 = vsub.s32 %v609, %v611
      %v613 = vrot.slane %v605, %v612
      %v615 = vunpack.c.l.s4 1966171168
      %v616 = vunpack.c.0.s8 %v615
      %v617 = vlaneseq
      %v618 = vshrl.u32 %v617, 7
      %v619 = vsub.s32 %v616, %v618
      %v620 = vrot.slane %v606, %v619
      %v621 = vcombine.low %v613, %v620
      %623 = vst [vmem:[%s184] sm:$0xff] %v621
      %p624 = scmp.lt.s32.totalorder %s16, 7
      %s625 = scalar_select %p624, %s16, 7
      %s626 = smul.addr %s625, 8
      %s627 = scalar_lea.vmem %s3, %s626
      // Predicated region
      $region33: #{generator_forward.5} parent=31 // pred_check
        %p628 = pneg %p107
      $region34: #{generator_forward.5} parent=31 // pred_check_branch
        %630 = sbr.rel (%p628) target = $region36
      $region35: #{generator_forward.5} parent=31 // pred_region
        _
      $region36: #{generator_forward.5} parent=31 // pred_fallthru
        _
    $region32: #{generator_forward.5} parent=5 // pred_fallthru
      _
    %p631 = scmp.le.s32.totalorder 2, %s11
    // Predicated region
    $region37: #{generator_forward.5} parent=5 // pred_check
      %p632 = pneg %p631
    $region38: #{generator_forward.5} parent=5 // pred_check_branch
      %634 = sbr.rel (%p632) target = $region40
    $region39: #{generator_forward.5} parent=5 // pred_region
      %s635 = ssub.s32 %s11, 2
      // Predicated region
      $region41: #{generator_forward.5} parent=39 // pred_check
        %p636 = pneg %p113
      $region42: #{generator_forward.5} parent=39 // pred_check_branch
        %638 = sbr.rel (%p636) target = $region44
      $region43: #{generator_forward.5} parent=39 // pred_region
        %p639 = scmp.lt.s32.totalorder %s17, 7
        %s640 = scalar_select %p639, %s17, 7
        %s641 = smul.addr %s640, 8
        %s642 = scalar_lea.vmem %s3, %s641
      $region44: #{generator_forward.5} parent=39 // pred_fallthru
        _
    $region40: #{generator_forward.5} parent=5 // pred_fallthru
      _
  $region6: #{generator_forward.5} parent=0 // loop_footer
    %s15 = sadd.s32 1, %s11
  $region7: #{generator_forward.5} parent=0 // loop_footer_branch
    %10 = sbr.rel target = $region3
  $region8: #{generator_forward.5} parent=0 // loop_exit
    _

</llo_original>
